<compile_context>
chip_gen: v7x
topology: tpu7x:2x2x1
jax: 0.10.0
libtpu: 0.0.40
codegen_flags: <defaults>
</compile_context>

<pallas_src>
import jax
import jax.numpy as jnp
from jax.experimental import pallas as pl
from jax.experimental.pallas import tpu as pltpu


def _round_up(x, m):
    return ((x + m - 1) // m) * m


def _leaky_relu(x, slope=0.2):
    # max(x, slope*x) == LeakyReLU(slope) for 0 < slope < 1.
    return jnp.maximum(x, slope * x)


# Packed-bias sublane offsets (all multiples of 8 -> sublane aligned):
# [b1(64) | b2(16) | b3(32) | b4(8) | pad(8)] -> 128 rows.
_B1 = (0, 64)
_B2 = (64, 80)
_B3 = (80, 112)
_B4 = (112, 120)


def mlp_decoder_kernel(zt_ref, w1_ref, w2_ref, w3_ref, w4_ref, bias_ref, ot_ref):
    # zt_ref: [8, TB] f32   (latent features on sublanes, batch on lanes)
    # wN_ref: bf16, PyTorch layout [out_features, in_features]
    # bias_ref: [128, 1] f32 packed biases
    x = zt_ref[...].astype(jnp.bfloat16)

    b1 = bias_ref[_B1[0]:_B1[1], :]      # [64, 1]
    b2 = bias_ref[_B2[0]:_B2[1], :]      # [16, 1]
    b3 = bias_ref[_B3[0]:_B3[1], :]      # [32, 1]
    b4 = bias_ref[_B4[0]:_B4[1], :]      # [8, 1]

    h = jnp.dot(w1_ref[...], x, preferred_element_type=jnp.float32) + b1   # [64, TB]
    h = _leaky_relu(h)
    h = jnp.dot(w2_ref[...], h.astype(jnp.bfloat16),
                preferred_element_type=jnp.float32) + b2                   # [16, TB]
    h = _leaky_relu(h)
    h = jnp.dot(w3_ref[...], h.astype(jnp.bfloat16),
                preferred_element_type=jnp.float32) + b3                   # [32, TB]
    h = _leaky_relu(h)
    h = jnp.dot(w4_ref[...], h.astype(jnp.bfloat16),
                preferred_element_type=jnp.float32) + b4                   # [8, TB]

    ot_ref[...] = h.astype(ot_ref.dtype)


def make_params(key):
    """Deterministic init matching nn.Linear shapes: W [out, in], b [out]."""
    dims = [(8, 64), (64, 16), (16, 32), (32, 8)]
    params = []
    for (fan_in, fan_out) in dims:
        key, kw, kb = jax.random.split(key, 3)
        bound = 1.0 / (fan_in ** 0.5)
        w = jax.random.uniform(kw, (fan_out, fan_in), jnp.float32, -bound, bound)
        b = jax.random.uniform(kb, (fan_out,), jnp.float32, -bound, bound)
        params.append((w, b))
    return params


def _pack_biases(params):
    flat = jnp.concatenate([b for (_, b) in params])      # length 120
    flat = jnp.pad(flat, (0, 128 - flat.shape[0]))
    return flat.reshape(128, 1)


def latent_decoder(z, params, *, block_b=8192):
    B, f_in = z.shape
    assert f_in == 8, "latent dim must be 8"

    # Lane-dense batch tile: multiple of 256 (fills the 2x256 MXU N dim on
    # v6e/v7x; also a multiple of 128 for v5e).  Capped at block_b, and at
    # half the batch (rounded up) so the grid has >=2 iterations on large B
    # and v7x's 2 TensorCores both get work.
    half = _round_up(max((B + 1) // 2, 1), 256)
    TB = max(256, min(block_b, half))
    B_pad = _round_up(B, TB)
    grid = (B_pad // TB,)

    zt = z.T                                               # [8, B]
    if B_pad != B:
        zt = jnp.pad(zt, ((0, 0), (0, B_pad - B)))         # only when B % TB != 0

    w1, w2, w3, w4 = (w.astype(jnp.bfloat16) for (w, _) in params)
    bias = _pack_biases(params)                            # f32 [128, 1]

    macs_per_sample = 8 * 64 + 64 * 16 + 16 * 32 + 32 * 8  # 2304
    weight_bytes = 2 * sum(int(w.size) for w in (w1, w2, w3, w4)) + 128 * 4
    cost = pl.CostEstimate(
        flops=2 * macs_per_sample * B_pad,
        transcendentals=0,
        bytes_accessed=4 * (8 + 8) * B_pad + weight_bytes,
    )

    ot = pl.pallas_call(
        mlp_decoder_kernel,
        out_shape=jax.ShapeDtypeStruct((8, B_pad), jnp.float32),
        grid=grid,
        in_specs=[
            pl.BlockSpec((8, TB), lambda i: (0, i)),        # z tile (moves with grid)
            pl.BlockSpec(w1.shape, lambda i: (0, 0)),       # weights: VMEM-resident
            pl.BlockSpec(w2.shape, lambda i: (0, 0)),
            pl.BlockSpec(w3.shape, lambda i: (0, 0)),
            pl.BlockSpec(w4.shape, lambda i: (0, 0)),
            pl.BlockSpec((128, 1), lambda i: (0, 0)),       # packed biases
        ],
        out_specs=pl.BlockSpec((8, TB), lambda i: (0, i)),  # lane-dense output
        compiler_params=pltpu.CompilerParams(
            dimension_semantics=("parallel",),
            vmem_limit_bytes=32 * 1024 * 1024,              # > v5e 16 MiB default,
        ),                                                  # << v7x 64 MiB physical
        cost_estimate=cost,
    )(zt, w1, w2, w3, w4, bias)

    return ot[:, :B].T                                      # back to [B, 8]


def latent_decoder_ref(z, params):
    h = z
    for i, (w, b) in enumerate(params):
        h = h @ w.T + b
        if i < len(params) - 1:
            h = jnp.where(h > 0, h, 0.2 * h)
    return h


if __name__ == "__main__":
    key = jax.random.PRNGKey(0)
    kz, kp = jax.random.split(key)

    B = 8
    z = jax.random.normal(kz, (B, 8), jnp.float32)
    params = make_params(kp)

    out = latent_decoder(z, params)
    out = jax.block_until_ready(out)

    ref = latent_decoder_ref(z, params)
    assert out.shape == (B, 8)
    # bf16 dot operands -> relaxed tolerance vs. the f32 reference.
    assert jnp.allclose(out, ref, atol=5e-2, rtol=5e-2)

    print("KERNEL_OK")
</pallas_src>

<mosaic_0001>
module attributes {stable_mosaic.version = 11 : i64} {
  func.func @mlp_decoder_kernel(%arg0: i32, %arg1: memref<8x256xf32, #tpu.memory_space<vmem>>, %arg2: memref<64x8xbf16, #tpu.memory_space<vmem>>, %arg3: memref<16x64xbf16, #tpu.memory_space<vmem>>, %arg4: memref<32x16xbf16, #tpu.memory_space<vmem>>, %arg5: memref<8x32xbf16, #tpu.memory_space<vmem>>, %arg6: memref<128x1xf32, #tpu.memory_space<vmem>>, %arg7: memref<8x256xf32, #tpu.memory_space<vmem>>) attributes {dimension_semantics = [#tpu.dimension_semantics<parallel>], iteration_bounds = array<i64: 1>, scalar_prefetch = 0 : i64, scratch_operands = 0 : i64, tpu.core_type = #tpu.core_type<tc>, window_params = [{transform_indices = @transform_0, window_bounds = array<i64: 8, 256>}, {pipeline_mode = #tpu.pipeline_mode<synchronous>, transform_indices = @transform_1, window_bounds = array<i64: 64, 8>}, {pipeline_mode = #tpu.pipeline_mode<synchronous>, transform_indices = @transform_2, window_bounds = array<i64: 16, 64>}, {pipeline_mode = #tpu.pipeline_mode<synchronous>, transform_indices = @transform_3, window_bounds = array<i64: 32, 16>}, {pipeline_mode = #tpu.pipeline_mode<synchronous>, transform_indices = @transform_4, window_bounds = array<i64: 8, 32>}, {pipeline_mode = #tpu.pipeline_mode<synchronous>, transform_indices = @transform_5, window_bounds = array<i64: 128, 1>}, {transform_indices = @transform_6, window_bounds = array<i64: 8, 256>}]} {
    %c0 = arith.constant 0 : index
    %c0_0 = arith.constant 0 : index
    %0 = vector.load %arg1[%c0, %c0_0] : memref<8x256xf32, #tpu.memory_space<vmem>>, vector<8x256xf32>
    %1 = arith.truncf %0 : vector<8x256xf32> to vector<8x256xbf16>
    %c0_1 = arith.constant 0 : index
    %c0_2 = arith.constant 0 : index
    %2 = vector.load %arg6[%c0_1, %c0_2] : memref<128x1xf32, #tpu.memory_space<vmem>>, vector<64x1xf32>
    %c64 = arith.constant 64 : index
    %c0_3 = arith.constant 0 : index
    %3 = vector.load %arg6[%c64, %c0_3] : memref<128x1xf32, #tpu.memory_space<vmem>>, vector<16x1xf32>
    %c80 = arith.constant 80 : index
    %c0_4 = arith.constant 0 : index
    %4 = vector.load %arg6[%c80, %c0_4] : memref<128x1xf32, #tpu.memory_space<vmem>>, vector<32x1xf32>
    %c112 = arith.constant 112 : index
    %c0_5 = arith.constant 0 : index
    %5 = vector.load %arg6[%c112, %c0_5] : memref<128x1xf32, #tpu.memory_space<vmem>>, vector<8x1xf32>
    %c0_6 = arith.constant 0 : index
    %c0_7 = arith.constant 0 : index
    %6 = vector.load %arg2[%c0_6, %c0_7] : memref<64x8xbf16, #tpu.memory_space<vmem>>, vector<64x8xbf16>
    %cst = arith.constant dense<0.000000e+00> : vector<64x256xf32>
    %7 = tpu.matmul %6, %1, %cst {dimension_numbers = #tpu.dot_dimension_numbers<[1], [0], [0], [1], [0, 0, 1, 1], [], []>} : vector<64x8xbf16>, vector<8x256xbf16>, vector<64x256xf32> -> vector<64x256xf32>
    %8 = vector.broadcast %2 : vector<64x1xf32> to vector<64x256xf32>
    %9 = arith.addf %7, %8 : vector<64x256xf32>
    %cst_8 = arith.constant 2.000000e-01 : f32
    %10 = vector.broadcast %cst_8 : f32 to vector<64x256xf32>
    %11 = arith.mulf %10, %9 : vector<64x256xf32>
    %12 = arith.maximumf %9, %11 : vector<64x256xf32>
    %c0_9 = arith.constant 0 : index
    %c0_10 = arith.constant 0 : index
    %13 = vector.load %arg3[%c0_9, %c0_10] : memref<16x64xbf16, #tpu.memory_space<vmem>>, vector<16x64xbf16>
    %14 = arith.truncf %12 : vector<64x256xf32> to vector<64x256xbf16>
    %cst_11 = arith.constant dense<0.000000e+00> : vector<16x256xf32>
    %15 = tpu.matmul %13, %14, %cst_11 {dimension_numbers = #tpu.dot_dimension_numbers<[1], [0], [0], [1], [0, 0, 1, 1], [], []>} : vector<16x64xbf16>, vector<64x256xbf16>, vector<16x256xf32> -> vector<16x256xf32>
    %16 = vector.broadcast %3 : vector<16x1xf32> to vector<16x256xf32>
    %17 = arith.addf %15, %16 : vector<16x256xf32>
    %cst_12 = arith.constant 2.000000e-01 : f32
    %18 = vector.broadcast %cst_12 : f32 to vector<16x256xf32>
    %19 = arith.mulf %18, %17 : vector<16x256xf32>
    %20 = arith.maximumf %17, %19 : vector<16x256xf32>
    %c0_13 = arith.constant 0 : index
    %c0_14 = arith.constant 0 : index
    %21 = vector.load %arg4[%c0_13, %c0_14] : memref<32x16xbf16, #tpu.memory_space<vmem>>, vector<32x16xbf16>
    %22 = arith.truncf %20 : vector<16x256xf32> to vector<16x256xbf16>
    %cst_15 = arith.constant dense<0.000000e+00> : vector<32x256xf32>
    %23 = tpu.matmul %21, %22, %cst_15 {dimension_numbers = #tpu.dot_dimension_numbers<[1], [0], [0], [1], [0, 0, 1, 1], [], []>} : vector<32x16xbf16>, vector<16x256xbf16>, vector<32x256xf32> -> vector<32x256xf32>
    %24 = vector.broadcast %4 : vector<32x1xf32> to vector<32x256xf32>
    %25 = arith.addf %23, %24 : vector<32x256xf32>
    %cst_16 = arith.constant 2.000000e-01 : f32
    %26 = vector.broadcast %cst_16 : f32 to vector<32x256xf32>
    %27 = arith.mulf %26, %25 : vector<32x256xf32>
    %28 = arith.maximumf %25, %27 : vector<32x256xf32>
    %c0_17 = arith.constant 0 : index
    %c0_18 = arith.constant 0 : index
    %29 = vector.load %arg5[%c0_17, %c0_18] : memref<8x32xbf16, #tpu.memory_space<vmem>>, vector<8x32xbf16>
    %30 = arith.truncf %28 : vector<32x256xf32> to vector<32x256xbf16>
    %cst_19 = arith.constant dense<0.000000e+00> : vector<8x256xf32>
    %31 = tpu.matmul %29, %30, %cst_19 {dimension_numbers = #tpu.dot_dimension_numbers<[1], [0], [0], [1], [0, 0, 1, 1], [], []>} : vector<8x32xbf16>, vector<32x256xbf16>, vector<8x256xf32> -> vector<8x256xf32>
    %32 = vector.broadcast %5 : vector<8x1xf32> to vector<8x256xf32>
    %33 = arith.addf %31, %32 : vector<8x256xf32>
    %c0_20 = arith.constant 0 : index
    %c0_21 = arith.constant 0 : index
    %34 = vector.load %arg7[%c0_20, %c0_21] : memref<8x256xf32, #tpu.memory_space<vmem>>, vector<8x256xf32>
    tpu.vector_store %arg7[%c0_20, %c0_21], %33 {strides = array<i32>} : memref<8x256xf32, #tpu.memory_space<vmem>>, vector<8x256xf32>,
    return
  }
  func.func @transform_0(%arg0: i32) -> (i32, i32) {
    %c0_i32 = arith.constant 0 : i32
    %c0_i32_0 = arith.constant 0 : i32
    return %c0_i32, %arg0 : i32, i32
  }
  func.func @transform_1(%arg0: i32) -> (i32, i32) {
    %c0_i32 = arith.constant 0 : i32
    %c0_i32_0 = arith.constant 0 : i32
    %c0_i32_1 = arith.constant 0 : i32
    return %c0_i32, %c0_i32_0 : i32, i32
  }
  func.func @transform_2(%arg0: i32) -> (i32, i32) {
    %c0_i32 = arith.constant 0 : i32
    %c0_i32_0 = arith.constant 0 : i32
    %c0_i32_1 = arith.constant 0 : i32
    return %c0_i32, %c0_i32_0 : i32, i32
  }
  func.func @transform_3(%arg0: i32) -> (i32, i32) {
    %c0_i32 = arith.constant 0 : i32
    %c0_i32_0 = arith.constant 0 : i32
    %c0_i32_1 = arith.constant 0 : i32
    return %c0_i32, %c0_i32_0 : i32, i32
  }
  func.func @transform_4(%arg0: i32) -> (i32, i32) {
    %c0_i32 = arith.constant 0 : i32
    %c0_i32_0 = arith.constant 0 : i32
    %c0_i32_1 = arith.constant 0 : i32
    return %c0_i32, %c0_i32_0 : i32, i32
  }
  func.func @transform_5(%arg0: i32) -> (i32, i32) {
    %c0_i32 = arith.constant 0 : i32
    %c0_i32_0 = arith.constant 0 : i32
    %c0_i32_1 = arith.constant 0 : i32
    return %c0_i32, %c0_i32_0 : i32, i32
  }
  func.func @transform_6(%arg0: i32) -> (i32, i32) {
    %c0_i32 = arith.constant 0 : i32
    %c0_i32_0 = arith.constant 0 : i32
    return %c0_i32, %arg0 : i32, i32
  }
}

</mosaic_0001>

<llo_original>
// kernel: tpu_custom_call.1
$region0: #{tpu_custom_call.1}
  #allocation0 [shape = 'u32[]', space=smem, size = 0x4, offset = 0x4, fixed_abs, tag = 'smem constant byte address 0x4 - core index']
  #allocation1 [shape = 'u32[144,128]{1,0:T(1,128)}', space=vmem, size = 0x12000, scoped, tag = 'internal scratch']
  %s0 = inlined_call_operand.vmem [shape: f32[8,256], index: 0, kind: input, shape index: {}]
  %s1 = inlined_call_operand.vmem [shape: bf16[64,8], index: 1, kind: input, shape index: {}]
  %s2 = inlined_call_operand.vmem [shape: bf16[16,64], index: 2, kind: input, shape index: {}]
  %s3 = inlined_call_operand.vmem [shape: bf16[32,16], index: 3, kind: input, shape index: {}]
  %s4 = inlined_call_operand.vmem [shape: bf16[8,32], index: 4, kind: input, shape index: {}]
  %s5 = inlined_call_operand.vmem [shape: f32[128,1], index: 5, kind: input, shape index: {}]
  %s6 = inlined_call_operand.hbm [shape: f32[8,256], index: 6, kind: output, shape index: {}]
  %s7 = sld [smem:[#allocation0]]
  $region34: #{tpu_custom_call.1} parent=0
    _
  %s9 = ssub.s32 1, %s7
  %s10 = scalar_select 0, %s9, %s7
  $region1: #{tpu_custom_call.1} parent=0
    #allocation2 [shape = 'u8[8192]{0}', space=vmem, size = 0x2000, scoped, tag = 'output window, operand 0, single buffered']
    #allocation3 [shape = 's32[1]{0}', space=sflag, size = 0x4, scoped, tag = 'scoped memory for tpu_custom_call.1']
    %11 = vsyncpa [#allocation3], 0
    // Predicated region
    $region2: #{tpu_custom_call.1} parent=1 // pred_check
      _
    $region3: #{tpu_custom_call.1} parent=1 // pred_check_branch
      %13 = sbr.rel (0) target = $region5
    $region4: #{tpu_custom_call.1} parent=1 // pred_region
      _
    $region5: #{tpu_custom_call.1} parent=1 // pred_fallthru
      _
    // Predicated region
    $region6: #{tpu_custom_call.1} parent=1 // pred_check
      _
    $region7: #{tpu_custom_call.1} parent=1 // pred_check_branch
      %15 = sbr.rel (0) target = $region9
    $region8: #{tpu_custom_call.1} parent=1 // pred_region
      _
    $region9: #{tpu_custom_call.1} parent=1 // pred_fallthru
      _
    // Predicated region
    $region10: #{tpu_custom_call.1} parent=1 // pred_check
      _
    $region11: #{tpu_custom_call.1} parent=1 // pred_check_branch
      %17 = sbr.rel (0) target = $region13
    $region12: #{tpu_custom_call.1} parent=1 // pred_region
      _
    $region13: #{tpu_custom_call.1} parent=1 // pred_fallthru
      _
    // Predicated region
    $region14: #{tpu_custom_call.1} parent=1 // pred_check
      _
    $region15: #{tpu_custom_call.1} parent=1 // pred_check_branch
      %19 = sbr.rel (0) target = $region17
    $region16: #{tpu_custom_call.1} parent=1 // pred_region
      _
    $region17: #{tpu_custom_call.1} parent=1 // pred_fallthru
      _
    // Predicated region
    $region18: #{tpu_custom_call.1} parent=1 // pred_check
      _
    $region19: #{tpu_custom_call.1} parent=1 // pred_check_branch
      %21 = sbr.rel (0) target = $region21
    $region20: #{tpu_custom_call.1} parent=1 // pred_region
      _
    $region21: #{tpu_custom_call.1} parent=1 // pred_fallthru
      _
    // Predicated region
    $region22: #{tpu_custom_call.1} parent=1 // pred_check
      _
    $region23: #{tpu_custom_call.1} parent=1 // pred_check_branch
      %23 = sbr.rel (0) target = $region25
    $region24: #{tpu_custom_call.1} parent=1 // pred_region
      _
    $region25: #{tpu_custom_call.1} parent=1 // pred_fallthru
      _
    %v25 = vld [vmem:[%s0] sm:$0xff]
    %v26 = vld [vmem:[%s0 + $0x8] sm:$0xff]
    %v27 = vpack.c.bf16 %v25, %v25
    %v28 = vpack.c.bf16 %v26, %v26
    %v29 = vld [vmem:[%s5] sm:$0xff]
    %v30 = vld [vmem:[%s5 + $0x8] sm:$0xff]
    %v31 = vld [vmem:[%s5 + $0x10] sm:$0xff]
    %v32 = vld [vmem:[%s5 + $0x18] sm:$0xff]
    %v33 = vld [vmem:[%s5 + $0x20] sm:$0xff]
    %v34 = vld [vmem:[%s5 + $0x28] sm:$0xff]
    %v35 = vld [vmem:[%s5 + $0x30] sm:$0xff]
    %v36 = vld [vmem:[%s5 + $0x38] sm:$0xff]
    %v37 = vld [vmem:[%s5 + $0x40] sm:$0xff]
    %v38 = vld [vmem:[%s5 + $0x48] sm:$0xff]
    %v39 = vld [vmem:[%s5 + $0x50] sm:$0xff]
    %v40 = vld [vmem:[%s5 + $0x58] sm:$0xff]
    %v41 = vld [vmem:[%s5 + $0x60] sm:$0xff]
    %v42 = vld [vmem:[%s5 + $0x68] sm:$0xff]
    %v43 = vld [vmem:[%s5 + $0x70] sm:$0xff]
    %v44 = vld [vmem:[%s1] sm:$0xf]
    %v45 = vld [vmem:[%s1 + $0x4] sm:$0xf]
    %v46 = vld [vmem:[%s1 + $0x8] sm:$0xf]
    %v47 = vld [vmem:[%s1 + $0xc] sm:$0xf]
    %v48 = vld [vmem:[%s1 + $0x10] sm:$0xf]
    %v49 = vld [vmem:[%s1 + $0x14] sm:$0xf]
    %v50 = vld [vmem:[%s1 + $0x18] sm:$0xf]
    %v51 = vld [vmem:[%s1 + $0x1c] sm:$0xf]
    %53 = vset.pattern.permute.xlu0 0
    %54 = vperm.xlu0 %53, %v29
    %v55 = vpop.permute.xlu0 %54
    %58 = vset.pattern.permute.xlu0 0
    %59 = vperm.xlu0 %58, %v30
    %v60 = vpop.permute.xlu0 %59
    %63 = vset.pattern.permute.xlu0 0
    %64 = vperm.xlu0 %63, %v31
    %v65 = vpop.permute.xlu0 %64
    %68 = vset.pattern.permute.xlu0 0
    %69 = vperm.xlu0 %68, %v32
    %v70 = vpop.permute.xlu0 %69
    %73 = vset.pattern.permute.xlu0 0
    %74 = vperm.xlu0 %73, %v33
    %v75 = vpop.permute.xlu0 %74
    %78 = vset.pattern.permute.xlu0 0
    %79 = vperm.xlu0 %78, %v34
    %v80 = vpop.permute.xlu0 %79
    %83 = vset.pattern.permute.xlu0 0
    %84 = vperm.xlu0 %83, %v35
    %v85 = vpop.permute.xlu0 %84
    %88 = vset.pattern.permute.xlu0 0
    %89 = vperm.xlu0 %88, %v36
    %v90 = vpop.permute.xlu0 %89
    %v100 = vunpack.c.l.b16 %v44
    %v101 = vunpack.c.l.b16 %v45
    %v102 = vunpack.c.l.b16 %v46
    %v103 = vunpack.c.l.b16 %v47
    %v104 = vunpack.c.l.b16 %v48
    %v105 = vunpack.c.l.b16 %v49
    %v106 = vunpack.c.l.b16 %v50
    %v107 = vunpack.c.l.b16 %v51
    %v108 = vpack.c.b16 %v101, %v100
    %v109 = vpack.c.b16 %v103, %v102
    %v110 = vpack.c.b16 %v105, %v104
    %v111 = vpack.c.b16 %v107, %v106
    %vm112 = vcmask 64512
    %v114 = vsel %vm112, %v108, 0
    %v117 = vsel %vm112, %v109, 0
    %v120 = vsel %vm112, %v110, 0
    %v123 = vsel %vm112, %v111, 0
    %vm125 = vcmask 1043456
    %v127 = vsel %vm125, %v27, 0
    %v130 = vsel %vm125, %v28, 0
    %132 = vmatprep.subr.bf16.mxu0 %v130
    %133 = vmatpush1.bf16.msra.mxu0 %v127
    %134 = vmatprep.subr.bf16.mxu0 0
    %135 = vmatpush1.bf16.msra.mxu0 0
    %136 = vmatprep.subr.bf16.mxu0 0
    %137 = vmatpush1.bf16.msra.mxu0 0
    %138 = vmatprep.subr.bf16.mxu0 0
    %139 = vmatpush1.bf16.msra.mxu0 0
    %140 = vmatprep.subr.bf16.mxu0 0
    %141 = vmatpush1.bf16.msra.mxu0 0
    %142 = vmatprep.subr.bf16.mxu0 0
    %143 = vmatpush1.bf16.msra.mxu0 0
    %144 = vmatprep.subr.bf16.mxu0 0
    %145 = vmatpush1.bf16.msra.mxu0 0
    %146 = vmatprep.subr.bf16.mxu0 0
    %147 = vmatpush1.bf16.msra.mxu0 0
    %148 = vmatprep.subr.bf16.mxu0 0
    %149 = vmatpush1.bf16.msra.mxu0 0
    %150 = vmatprep.subr.bf16.mxu0 0
    %151 = vmatpush1.bf16.msra.mxu0 0
    %152 = vmatprep.subr.bf16.mxu0 0
    %153 = vmatpush1.bf16.msra.mxu0 0
    %154 = vmatprep.subr.bf16.mxu0 0
    %155 = vmatpush1.bf16.msra.mxu0 0
    %156 = vmatprep.subr.bf16.mxu0 0
    %157 = vmatpush1.bf16.msra.mxu0 0
    %158 = vmatprep.subr.bf16.mxu0 0
    %159 = vmatpush1.bf16.msra.mxu0 0
    %160 = vmatprep.subr.bf16.mxu0 0
    %161 = vmatpush1.bf16.msra.mxu0 0
    %162 = vmatprep.subr.bf16.mxu0 0
    %163 = vmatpush1.bf16.msra.mxu0 0
    %164 = vmatprep.mubr.bf16.mxu0 0
    %165 = vmatmul.mubr.bf16.gmra.mrb[0].mxu0 %v114
    %v166 = vpop.f32.mrb[0].mxu0
    %v167 = vadd.f32 %v55, %v166
    %v168 = vpop.f32.mrb[0].mxu0
    %v169 = vadd.f32 %v55, %v168
    %v170 = vpop.f32.mrb[0].mxu0
    %v171 = vadd.f32 %v60, %v170
    %v172 = vpop.f32.mrb[0].mxu0
    %v173 = vadd.f32 %v60, %v172
    %174 = vmatprep.mubr.bf16.mxu0 0
    %175 = vmatmul.mubr.bf16.gmra.mrb[0].mxu0 %v117
    %v176 = vpop.f32.mrb[0].mxu0
    %v177 = vadd.f32 %v65, %v176
    %v178 = vpop.f32.mrb[0].mxu0
    %v179 = vadd.f32 %v65, %v178
    %v180 = vpop.f32.mrb[0].mxu0
    %v181 = vadd.f32 %v70, %v180
    %v182 = vpop.f32.mrb[0].mxu0
    %v183 = vadd.f32 %v70, %v182
    %184 = vmatprep.mubr.bf16.mxu0 0
    %185 = vmatmul.mubr.bf16.gmra.mrb[0].mxu0 %v120
    %v186 = vpop.f32.mrb[0].mxu0
    %v187 = vadd.f32 %v75, %v186
    %v188 = vpop.f32.mrb[0].mxu0
    %v189 = vadd.f32 %v75, %v188
    %v190 = vpop.f32.mrb[0].mxu0
    %v191 = vadd.f32 %v80, %v190
    %v192 = vpop.f32.mrb[0].mxu0
    %v193 = vadd.f32 %v80, %v192
    %194 = vmatprep.mubr.bf16.mxu0 0
    %195 = vmatmul.mubr.bf16.gmra.mrb[0].mxu0 %v123
    %v196 = vpop.f32.mrb[0].mxu0
    %v197 = vadd.f32 %v85, %v196
    %v198 = vpop.f32.mrb[0].mxu0
    %v199 = vadd.f32 %v85, %v198
    %v200 = vpop.f32.mrb[0].mxu0
    %v201 = vadd.f32 %v90, %v200
    %v202 = vpop.f32.mrb[0].mxu0
    %v203 = vadd.f32 %v90, %v202
    %204 = vdwg.mxu0
    %v205 = vmul.f32 %v167, 0.2
    %v206 = vmul.f32 %v169, 0.2
    %v207 = vmul.f32 %v171, 0.2
    %v208 = vmul.f32 %v173, 0.2
    %v209 = vmul.f32 %v177, 0.2
    %v210 = vmul.f32 %v179, 0.2
    %v211 = vmul.f32 %v181, 0.2
    %v212 = vmul.f32 %v183, 0.2
    %v213 = vmul.f32 %v187, 0.2
    %v214 = vmul.f32 %v189, 0.2
    %v215 = vmul.f32 %v191, 0.2
    %v216 = vmul.f32 %v193, 0.2
    %v217 = vmul.f32 %v197, 0.2
    %v218 = vmul.f32 %v199, 0.2
    %v219 = vmul.f32 %v201, 0.2
    %v220 = vmul.f32 %v203, 0.2
    %v221 = vmax.f32 %v167, %v205
    %v222 = vmax.f32 %v169, %v206
    %v223 = vmax.f32 %v171, %v207
    %v224 = vmax.f32 %v173, %v208
    %v225 = vmax.f32 %v177, %v209
    %v226 = vmax.f32 %v179, %v210
    %v227 = vmax.f32 %v181, %v211
    %v228 = vmax.f32 %v183, %v212
    %v229 = vmax.f32 %v187, %v213
    %v230 = vmax.f32 %v189, %v214
    %v231 = vmax.f32 %v191, %v215
    %v232 = vmax.f32 %v193, %v216
    %v233 = vmax.f32 %v197, %v217
    %v234 = vmax.f32 %v199, %v218
    %v235 = vmax.f32 %v201, %v219
    %v236 = vmax.f32 %v203, %v220
    %v237 = vld [vmem:[%s2] sm:$0xf]
    %v238 = vld [vmem:[%s2 + $0x4] sm:$0xf]
    %v239 = vpack.c.bf16 %v223, %v221
    %v240 = vpack.c.bf16 %v224, %v222
    %v241 = vpack.c.bf16 %v227, %v225
    %v242 = vpack.c.bf16 %v228, %v226
    %v243 = vpack.c.bf16 %v231, %v229
    %v244 = vpack.c.bf16 %v232, %v230
    %v245 = vpack.c.bf16 %v235, %v233
    %v246 = vpack.c.bf16 %v236, %v234
    %248 = vset.pattern.permute.xlu0 0
    %249 = vperm.xlu0 %248, %v37
    %v250 = vpop.permute.xlu0 %249
    %253 = vset.pattern.permute.xlu0 0
    %254 = vperm.xlu0 %253, %v38
    %v255 = vpop.permute.xlu0 %254
    %v259 = vunpack.c.l.b16 %v237
    %v260 = vunpack.c.l.b16 %v238
    %v261 = vpack.c.b16 %v260, %v259
    %vm262 = vcmask 523264
    %v264 = vsel %vm262, %v261, 0
    %266 = vmatprep.subr.bf16.mxu0 %v240
    %267 = vmatpush1.bf16.msra.mxu0 %v239
    %268 = vmatprep.subr.bf16.mxu0 %v242
    %269 = vmatpush1.bf16.msra.mxu0 %v241
    %270 = vmatprep.subr.bf16.mxu0 %v244
    %271 = vmatpush1.bf16.msra.mxu0 %v243
    %272 = vmatprep.subr.bf16.mxu0 %v246
    %273 = vmatpush1.bf16.msra.mxu0 %v245
    %274 = vmatprep.subr.bf16.mxu0 0
    %275 = vmatpush1.bf16.msra.mxu0 0
    %276 = vmatprep.subr.bf16.mxu0 0
    %277 = vmatpush1.bf16.msra.mxu0 0
    %278 = vmatprep.subr.bf16.mxu0 0
    %279 = vmatpush1.bf16.msra.mxu0 0
    %280 = vmatprep.subr.bf16.mxu0 0
    %281 = vmatpush1.bf16.msra.mxu0 0
    %282 = vmatprep.subr.bf16.mxu0 0
    %283 = vmatpush1.bf16.msra.mxu0 0
    %284 = vmatprep.subr.bf16.mxu0 0
    %285 = vmatpush1.bf16.msra.mxu0 0
    %286 = vmatprep.subr.bf16.mxu0 0
    %287 = vmatpush1.bf16.msra.mxu0 0
    %288 = vmatprep.subr.bf16.mxu0 0
    %289 = vmatpush1.bf16.msra.mxu0 0
    %290 = vmatprep.subr.bf16.mxu0 0
    %291 = vmatpush1.bf16.msra.mxu0 0
    %292 = vmatprep.subr.bf16.mxu0 0
    %293 = vmatpush1.bf16.msra.mxu0 0
    %294 = vmatprep.subr.bf16.mxu0 0
    %295 = vmatpush1.bf16.msra.mxu0 0
    %296 = vmatprep.subr.bf16.mxu0 0
    %297 = vmatpush1.bf16.msra.mxu0 0
    %298 = vmatprep.mubr.bf16.mxu0 0
    %299 = vmatmul.mubr.bf16.gmra.mrb[0].mxu0 %v264
    %v300 = vpop.f32.mrb[0].mxu0
    %v301 = vadd.f32 %v250, %v300
    %v302 = vpop.f32.mrb[0].mxu0
    %v303 = vadd.f32 %v250, %v302
    %v304 = vpop.f32.mrb[0].mxu0
    %v305 = vadd.f32 %v255, %v304
    %v306 = vpop.f32.mrb[0].mxu0
    %v307 = vadd.f32 %v255, %v306
    %308 = vdwg.mxu0
    %v309 = vmul.f32 %v301, 0.2
    %v310 = vmul.f32 %v303, 0.2
    %v311 = vmul.f32 %v305, 0.2
    %v312 = vmul.f32 %v307, 0.2
    %v313 = vmax.f32 %v301, %v309
    %v314 = vmax.f32 %v303, %v310
    %v315 = vmax.f32 %v305, %v311
    %v316 = vmax.f32 %v307, %v312
    %v317 = vld [vmem:[%s3] sm:$0xf]
    %v318 = vld [vmem:[%s3 + $0x4] sm:$0xf]
    %v319 = vld [vmem:[%s3 + $0x8] sm:$0xf]
    %v320 = vld [vmem:[%s3 + $0xc] sm:$0xf]
    %v321 = vpack.c.bf16 %v315, %v313
    %v322 = vpack.c.bf16 %v316, %v314
    %324 = vset.pattern.permute.xlu0 0
    %325 = vperm.xlu0 %324, %v39
    %v326 = vpop.permute.xlu0 %325
    %329 = vset.pattern.permute.xlu0 0
    %330 = vperm.xlu0 %329, %v40
    %v331 = vpop.permute.xlu0 %330
    %334 = vset.pattern.permute.xlu0 0
    %335 = vperm.xlu0 %334, %v41
    %v336 = vpop.permute.xlu0 %335
    %339 = vset.pattern.permute.xlu0 0
    %340 = vperm.xlu0 %339, %v42
    %v341 = vpop.permute.xlu0 %340
    %v347 = vunpack.c.l.b16 %v317
    %v348 = vunpack.c.l.b16 %v318
    %v349 = vunpack.c.l.b16 %v319
    %v350 = vunpack.c.l.b16 %v320
    %v351 = vpack.c.b16 %v348, %v347
    %v352 = vpack.c.b16 %v350, %v349
    %vm353 = vcmask 130048
    %v355 = vsel %vm353, %v351, 0
    %v358 = vsel %vm353, %v352, 0
    %360 = vmatprep.subr.bf16.mxu0 %v322
    %361 = vmatpush1.bf16.msra.mxu0 %v321
    %362 = vmatprep.subr.bf16.mxu0 0
    %363 = vmatpush1.bf16.msra.mxu0 0
    %364 = vmatprep.subr.bf16.mxu0 0
    %365 = vmatpush1.bf16.msra.mxu0 0
    %366 = vmatprep.subr.bf16.mxu0 0
    %367 = vmatpush1.bf16.msra.mxu0 0
    %368 = vmatprep.subr.bf16.mxu0 0
    %369 = vmatpush1.bf16.msra.mxu0 0
    %370 = vmatprep.subr.bf16.mxu0 0
    %371 = vmatpush1.bf16.msra.mxu0 0
    %372 = vmatprep.subr.bf16.mxu0 0
    %373 = vmatpush1.bf16.msra.mxu0 0
    %374 = vmatprep.subr.bf16.mxu0 0
    %375 = vmatpush1.bf16.msra.mxu0 0
    %376 = vmatprep.subr.bf16.mxu0 0
    %377 = vmatpush1.bf16.msra.mxu0 0
    %378 = vmatprep.subr.bf16.mxu0 0
    %379 = vmatpush1.bf16.msra.mxu0 0
    %380 = vmatprep.subr.bf16.mxu0 0
    %381 = vmatpush1.bf16.msra.mxu0 0
    %382 = vmatprep.subr.bf16.mxu0 0
    %383 = vmatpush1.bf16.msra.mxu0 0
    %384 = vmatprep.subr.bf16.mxu0 0
    %385 = vmatpush1.bf16.msra.mxu0 0
    %386 = vmatprep.subr.bf16.mxu0 0
    %387 = vmatpush1.bf16.msra.mxu0 0
    %388 = vmatprep.subr.bf16.mxu0 0
    %389 = vmatpush1.bf16.msra.mxu0 0
    %390 = vmatprep.subr.bf16.mxu0 0
    %391 = vmatpush1.bf16.msra.mxu0 0
    %392 = vmatprep.mubr.bf16.mxu0 0
    %393 = vmatmul.mubr.bf16.gmra.mrb[0].mxu0 %v355
    %v394 = vpop.f32.mrb[0].mxu0
    %v395 = vadd.f32 %v326, %v394
    %v396 = vpop.f32.mrb[0].mxu0
    %v397 = vadd.f32 %v326, %v396
    %v398 = vpop.f32.mrb[0].mxu0
    %v399 = vadd.f32 %v331, %v398
    %v400 = vpop.f32.mrb[0].mxu0
    %v401 = vadd.f32 %v331, %v400
    %402 = vmatprep.mubr.bf16.mxu0 0
    %403 = vmatmul.mubr.bf16.gmra.mrb[0].mxu0 %v358
    %v404 = vpop.f32.mrb[0].mxu0
    %v405 = vadd.f32 %v336, %v404
    %v406 = vpop.f32.mrb[0].mxu0
    %v407 = vadd.f32 %v336, %v406
    %v408 = vpop.f32.mrb[0].mxu0
    %v409 = vadd.f32 %v341, %v408
    %v410 = vpop.f32.mrb[0].mxu0
    %v411 = vadd.f32 %v341, %v410
    %412 = vdwg.mxu0
    %v413 = vmul.f32 %v395, 0.2
    %v414 = vmul.f32 %v397, 0.2
    %v415 = vmul.f32 %v399, 0.2
    %v416 = vmul.f32 %v401, 0.2
    %v417 = vmul.f32 %v405, 0.2
    %v418 = vmul.f32 %v407, 0.2
    %v419 = vmul.f32 %v409, 0.2
    %v420 = vmul.f32 %v411, 0.2
    %v421 = vmax.f32 %v395, %v413
    %v422 = vmax.f32 %v397, %v414
    %v423 = vmax.f32 %v399, %v415
    %v424 = vmax.f32 %v401, %v416
    %v425 = vmax.f32 %v405, %v417
    %v426 = vmax.f32 %v407, %v418
    %v427 = vmax.f32 %v409, %v419
    %v428 = vmax.f32 %v411, %v420
    %v429 = vld [vmem:[%s4] sm:$0xf]
    %v430 = vpack.c.bf16 %v423, %v421
    %v431 = vpack.c.bf16 %v424, %v422
    %v432 = vpack.c.bf16 %v427, %v425
    %v433 = vpack.c.bf16 %v428, %v426
    %435 = vset.pattern.permute.xlu0 0
    %436 = vperm.xlu0 %435, %v43
    %v437 = vpop.permute.xlu0 %436
    %vm439 = vcmask 261120
    %v441 = vsel %vm439, %v429, 0
    %443 = vmatprep.subr.bf16.mxu0 %v431
    %444 = vmatpush1.bf16.msra.mxu0 %v430
    %445 = vmatprep.subr.bf16.mxu0 %v433
    %446 = vmatpush1.bf16.msra.mxu0 %v432
    %447 = vmatprep.subr.bf16.mxu0 0
    %448 = vmatpush1.bf16.msra.mxu0 0
    %449 = vmatprep.subr.bf16.mxu0 0
    %450 = vmatpush1.bf16.msra.mxu0 0
    %451 = vmatprep.subr.bf16.mxu0 0
    %452 = vmatpush1.bf16.msra.mxu0 0
    %453 = vmatprep.subr.bf16.mxu0 0
    %454 = vmatpush1.bf16.msra.mxu0 0
    %455 = vmatprep.subr.bf16.mxu0 0
    %456 = vmatpush1.bf16.msra.mxu0 0
    %457 = vmatprep.subr.bf16.mxu0 0
    %458 = vmatpush1.bf16.msra.mxu0 0
    %459 = vmatprep.subr.bf16.mxu0 0
    %460 = vmatpush1.bf16.msra.mxu0 0
    %461 = vmatprep.subr.bf16.mxu0 0
    %462 = vmatpush1.bf16.msra.mxu0 0
    %463 = vmatprep.subr.bf16.mxu0 0
    %464 = vmatpush1.bf16.msra.mxu0 0
    %465 = vmatprep.subr.bf16.mxu0 0
    %466 = vmatpush1.bf16.msra.mxu0 0
    %467 = vmatprep.subr.bf16.mxu0 0
    %468 = vmatpush1.bf16.msra.mxu0 0
    %469 = vmatprep.subr.bf16.mxu0 0
    %470 = vmatpush1.bf16.msra.mxu0 0
    %471 = vmatprep.subr.bf16.mxu0 0
    %472 = vmatpush1.bf16.msra.mxu0 0
    %473 = vmatprep.subr.bf16.mxu0 0
    %474 = vmatpush1.bf16.msra.mxu0 0
    %475 = vmatprep.mubr.bf16.mxu0 0
    %476 = vmatmul.mubr.bf16.gmra.mrb[0].mxu0 %v441
    %v477 = vpop.f32.mrb[0].mxu0
    %v478 = vadd.f32 %v437, %v477
    %v479 = vpop.f32.mrb[0].mxu0
    %v480 = vadd.f32 %v437, %v479
    %v481 = vpop.f32.mrb[0].mxu0
    %v482 = vpop.f32.mrb[0].mxu0
    %483 = vdwg.mxu0
    %484 = vst [vmem:[#allocation2] sm:$0xff] %v478
    %485 = vst [vmem:[#allocation2 + $0x8] sm:$0xff] %v480
    // Predicated region
    $region26: #{tpu_custom_call.1} parent=1 // pred_check
      _
    $region27: #{tpu_custom_call.1} parent=1 // pred_check_branch
      %487 = sbr.rel (0) target = $region29
    $region28: #{tpu_custom_call.1} parent=1 // pred_region
      %s489 = ssub.s32 256, 256
      %490 = vsyncadd [#allocation3], %s489
      %s492 = sshll.u32 [#allocation2], 4
      %s493 = int_to_ptr.vmem [resolvable:$true] %s492
      %495 = dma.vmem_to_hbm [thread:$0]  %s493, 256, %s6, [#allocation3]
    $region29: #{tpu_custom_call.1} parent=1 // pred_fallthru
      _
    // Predicated region
    $region30: #{tpu_custom_call.1} parent=1 // pred_check
      _
    $region31: #{tpu_custom_call.1} parent=1 // pred_check_branch
      %497 = sbr.rel (0) target = $region33
    $region32: #{tpu_custom_call.1} parent=1 // pred_region
      %498 = dma.done [#allocation3], 256
    $region33: #{tpu_custom_call.1} parent=1 // pred_fallthru
      _
    %499 = vsyncpa [#allocation3], 1

</llo_original>
